<compile_context>
chip_gen: v5e
topology: v5e:2x2
jax: 0.10.0
libtpu: 0.0.40
codegen_flags: <defaults>
</compile_context>

<pallas_src>
import functools

import jax
import jax.numpy as jnp
from jax.experimental import pallas as pl
from jax.experimental.pallas import tpu as pltpu


def _output_layer_kernel(xs_ref, w1a_ref, w1b_ref, b1a_ref, b1b_ref,
                         gamma_ref, beta_ref, aseg_ref, w2_ref, b2_ref,
                         w3_ref, b3_ref, out_ref, *, kt, bb, inv_nc, eps):
    pad = (kt - 1) // 2
    c, m = gamma_ref.shape

    # Shared (tiny) operands hoisted out of the per-batch unroll.
    aseg = aseg_ref[...]          # (M, M) 0/1 block-diagonal per timestep
    gamma = gamma_ref[...]        # (C, M)
    beta = beta_ref[...]
    w2 = w2_ref[...]              # (C, C)
    w3 = w3_ref[...]              # (out_dim, C)

    for bi in range(bb):          # static unroll: a few vregs of live state each
        # ---- tconv1: temporal GLU conv (channels-first (C, M) tiles) -------
        acc_a = jnp.zeros((c, m), jnp.float32)   # value half
        acc_b = jnp.zeros((c, m), jnp.float32)   # gate half
        for dt in range(kt):      # static, kt small (e.g. 3)
            s = xs_ref[bi, dt]    # (C, M): pre-shifted, lane-aligned window
            acc_a = acc_a + jnp.dot(w1a_ref[dt], s,
                                    preferred_element_type=jnp.float32)
            acc_b = acc_b + jnp.dot(w1b_ref[dt], s,
                                    preferred_element_type=jnp.float32)
        acc_a = acc_a + b1a_ref[...]             # (C, 1) lane broadcast
        acc_b = acc_b + b1b_ref[...]
        y1 = (acc_a + xs_ref[bi, pad]) * jax.nn.sigmoid(acc_b)   # GLU, (C, M)

        # ---- LayerNorm over (N, C) jointly per timestep ---------------------
        # Sublane reduce over C, then one MXU matmul against the 0/1 segment
        # matrix both sums over each timestep's N lanes and broadcasts back.
        s1 = jnp.sum(y1, axis=0, keepdims=True)                  # (1, M)
        mean = jnp.dot(s1, aseg, preferred_element_type=jnp.float32) * inv_nc
        diff = y1 - mean
        s2 = jnp.sum(diff * diff, axis=0, keepdims=True)
        var = jnp.dot(s2, aseg, preferred_element_type=jnp.float32) * inv_nc
        x_ln = diff * jax.lax.rsqrt(var + eps) * gamma + beta    # (C, M)

        # ---- tconv2: 1x1 conv + residual, sigmoid ---------------------------
        h = jnp.dot(w2, x_ln, preferred_element_type=jnp.float32) + b2_ref[...]
        y2 = jax.nn.sigmoid(h + x_ln)                            # (C, M)

        # ---- fc_pretrain: 1x1 conv C -> out_dim (lane-dense (out_dim, M)) ---
        out = jnp.dot(w3, y2, preferred_element_type=jnp.float32) + b3_ref[...]
        out_ref[bi] = out.astype(out_ref.dtype)


def _pick_batch_block(b, cap=8):
    """Largest divisor of b up to `cap`: batches fused per grid step."""
    bb = 1
    for cand in range(1, min(b, cap) + 1):
        if b % cand == 0:
            bb = cand
    return bb


def output_layer_pallas(x_nchw, params, *, kt):
    # kt must be odd for the residual add to be shape-consistent (same
    # constraint the PyTorch code implicitly has).
    assert kt % 2 == 1
    B, C, T, N = x_nchw.shape
    out_dim = params["w3"].shape[0]
    pad = (kt - 1) // 2
    M = T * N
    BB = _pick_batch_block(B)
    G = B // BB

    # ---- host-side layout prep (tiny XLA ops, fused under jit) --------------
    # Zero-pad time, flatten (T, N) time-major so a temporal shift is a
    # lane-aligned slice; pre-stack the kt shifted windows.
    xpad = jnp.pad(x_nchw, ((0, 0), (0, 0), (pad, pad), (0, 0)))   # (B, C, Tp, N)
    xflat = xpad.reshape(B, C, (T + kt - 1) * N)
    xshift = jnp.stack([xflat[:, :, dt * N: dt * N + M] for dt in range(kt)],
                       axis=1)                                     # (B, kt, C, M)

    # Weights stay in PyTorch (out, in) orientation: they are matmul LHS here.
    w1 = params["w1"]                                   # (2C, C, kt)
    w1a = jnp.transpose(w1[:C], (2, 0, 1))              # (kt, C, C)  value half
    w1b = jnp.transpose(w1[C:], (2, 0, 1))              # (kt, C, C)  gate half
    b1a = params["b1"][:C].reshape(C, 1)
    b1b = params["b1"][C:].reshape(C, 1)
    gamma_cm = jnp.tile(params["gamma"].T, (1, T))      # (C, M): col t*N+n -> gamma[n, c]
    beta_cm = jnp.tile(params["beta"].T, (1, T))
    tblk = jnp.arange(M) // N
    aseg = (tblk[:, None] == tblk[None, :]).astype(jnp.float32)    # (M, M) 0/1
    w2 = params["w2"]                                   # (C, C)
    b2 = params["b2"].reshape(C, 1)
    w3 = params["w3"]                                   # (out_dim, C)
    b3 = params["b3"].reshape(out_dim, 1)

    kernel = functools.partial(_output_layer_kernel, kt=kt, bb=BB,
                               inv_nc=1.0 / (N * C), eps=1e-5)

    out = pl.pallas_call(
        kernel,
        out_shape=jax.ShapeDtypeStruct((B, out_dim, M), jnp.float32),
        grid=(G,),
        in_specs=[
            pl.BlockSpec((BB, kt, C, M), lambda g: (g, 0, 0, 0)),  # pre-shifted x
            pl.BlockSpec((kt, C, C), lambda g: (0, 0, 0)),         # w1a
            pl.BlockSpec((kt, C, C), lambda g: (0, 0, 0)),         # w1b
            pl.BlockSpec((C, 1), lambda g: (0, 0)),                # b1a
            pl.BlockSpec((C, 1), lambda g: (0, 0)),                # b1b
            pl.BlockSpec((C, M), lambda g: (0, 0)),                # gamma (C, M)
            pl.BlockSpec((C, M), lambda g: (0, 0)),                # beta  (C, M)
            pl.BlockSpec((M, M), lambda g: (0, 0)),                # segment matrix
            pl.BlockSpec((C, C), lambda g: (0, 0)),                # w2
            pl.BlockSpec((C, 1), lambda g: (0, 0)),                # b2
            pl.BlockSpec((out_dim, C), lambda g: (0, 0)),          # w3
            pl.BlockSpec((out_dim, 1), lambda g: (0, 0)),          # b3
        ],
        out_specs=pl.BlockSpec((BB, out_dim, M), lambda g: (g, 0, 0)),
        compiler_params=pltpu.CompilerParams(
            # Batch-block axis parallel -> both TensorCores get work on v7x
            # when there is more than one block.
            dimension_semantics=("parallel",)),
    )(xshift, w1a, w1b, b1a, b1b, gamma_cm, beta_cm, aseg, w2, b2, w3, b3)

    # (B, out_dim, T*N) -> (B, out_dim, T, N): pure reshape, matches NCHW.
    return out.reshape(B, out_dim, T, N)


def output_layer_reference(x, params, *, kt, eps=1e-5):
    """Plain-JAX mirror of the PyTorch forward (NCHW), for validation."""
    B, C, T, N = x.shape
    pad = (kt - 1) // 2
    hp = jax.lax.Precision.HIGHEST
    xp = jnp.pad(x, ((0, 0), (0, 0), (pad, pad), (0, 0)))

    conv = jnp.zeros((B, 2 * C, T, N), jnp.float32)
    for dt in range(kt):
        conv = conv + jnp.einsum("oc,bctn->botn", params["w1"][:, :, dt],
                                 xp[:, :, dt:dt + T, :], precision=hp)
    conv = conv + params["b1"][None, :, None, None]
    y1 = (conv[:, :C] + x) * jax.nn.sigmoid(conv[:, C:])            # GLU

    z = jnp.transpose(y1, (0, 2, 3, 1))                             # (B, T, N, C)
    mean = jnp.mean(z, axis=(-2, -1), keepdims=True)
    var = jnp.mean((z - mean) ** 2, axis=(-2, -1), keepdims=True)
    z = (z - mean) / jnp.sqrt(var + eps) * params["gamma"] + params["beta"]
    x_ln = jnp.transpose(z, (0, 3, 1, 2))                           # (B, C, T, N)

    h = jnp.einsum("oc,bctn->botn", params["w2"], x_ln, precision=hp) \
        + params["b2"][None, :, None, None]
    y2 = jax.nn.sigmoid(h + x_ln)
    out = jnp.einsum("oc,bctn->botn", params["w3"], y2, precision=hp) \
        + params["b3"][None, :, None, None]
    return out


if __name__ == "__main__":
    key = jax.random.PRNGKey(0)
    B, C, T, N, out_dim, kt = 2, 8, 8, 16, 2, 3   # kt = t argument of OutputLayer

    ks = jax.random.split(key, 9)
    x = jax.random.normal(ks[0], (B, C, T, N), jnp.float32)
    params = {
        # tconv1 GLU conv: Conv2d(C, 2C, (kt, 1)) -> weight (2C, C, kt), bias (2C,)
        "w1": 0.3 * jax.random.normal(ks[1], (2 * C, C, kt), jnp.float32),
        "b1": 0.1 * jax.random.normal(ks[2], (2 * C,), jnp.float32),
        # LayerNorm([N, C])
        "gamma": 1.0 + 0.1 * jax.random.normal(ks[3], (N, C), jnp.float32),
        "beta": 0.1 * jax.random.normal(ks[4], (N, C), jnp.float32),
        # tconv2 (kt=1): Conv2d(C, C, (1, 1)) -> weight (C, C), bias (C,)
        "w2": 0.3 * jax.random.normal(ks[5], (C, C), jnp.float32),
        "b2": 0.1 * jax.random.normal(ks[6], (C,), jnp.float32),
        # fc_pretrain: Conv2d(C, out_dim, 1) -> weight (out_dim, C), bias (out_dim,)
        "w3": 0.3 * jax.random.normal(ks[7], (out_dim, C), jnp.float32),
        "b3": 0.1 * jax.random.normal(ks[8], (out_dim,), jnp.float32),
    }

    out = output_layer_pallas(x, params, kt=kt)
    out = jax.block_until_ready(out)

    ref = output_layer_reference(x, params, kt=kt)
    assert out.shape == (B, out_dim, T, N), out.shape
    max_err = float(jnp.max(jnp.abs(out - ref)))
    # Kernel matmuls use the MXU's native single-pass bf16 (default precision);
    # tolerance reflects bf16 input rounding vs the fp32 HIGHEST reference.
    assert jnp.allclose(out, ref, atol=2e-2, rtol=2e-2), f"max_err={max_err}"
    print("KERNEL_OK")
</pallas_src>

<mosaic_0001>
module attributes {stable_mosaic.version = 11 : i64} {
  func.func @_output_layer_kernel(%arg0: i32, %arg1: memref<2x3x8x128xf32, #tpu.memory_space<vmem>>, %arg2: memref<3x8x8xf32, #tpu.memory_space<vmem>>, %arg3: memref<3x8x8xf32, #tpu.memory_space<vmem>>, %arg4: memref<8x1xf32, #tpu.memory_space<vmem>>, %arg5: memref<8x1xf32, #tpu.memory_space<vmem>>, %arg6: memref<8x128xf32, #tpu.memory_space<vmem>>, %arg7: memref<8x128xf32, #tpu.memory_space<vmem>>, %arg8: memref<128x128xf32, #tpu.memory_space<vmem>>, %arg9: memref<8x8xf32, #tpu.memory_space<vmem>>, %arg10: memref<8x1xf32, #tpu.memory_space<vmem>>, %arg11: memref<2x8xf32, #tpu.memory_space<vmem>>, %arg12: memref<2x1xf32, #tpu.memory_space<vmem>>, %arg13: memref<2x2x128xf32, #tpu.memory_space<vmem>>) attributes {dimension_semantics = [#tpu.dimension_semantics<parallel>], iteration_bounds = array<i64: 1>, scalar_prefetch = 0 : i64, scratch_operands = 0 : i64, tpu.core_type = #tpu.core_type<tc>, window_params = [{transform_indices = @transform_0, window_bounds = array<i64: 2, 3, 8, 128>}, {pipeline_mode = #tpu.pipeline_mode<synchronous>, transform_indices = @transform_1, window_bounds = array<i64: 3, 8, 8>}, {pipeline_mode = #tpu.pipeline_mode<synchronous>, transform_indices = @transform_2, window_bounds = array<i64: 3, 8, 8>}, {pipeline_mode = #tpu.pipeline_mode<synchronous>, transform_indices = @transform_3, window_bounds = array<i64: 8, 1>}, {pipeline_mode = #tpu.pipeline_mode<synchronous>, transform_indices = @transform_4, window_bounds = array<i64: 8, 1>}, {pipeline_mode = #tpu.pipeline_mode<synchronous>, transform_indices = @transform_5, window_bounds = array<i64: 8, 128>}, {pipeline_mode = #tpu.pipeline_mode<synchronous>, transform_indices = @transform_6, window_bounds = array<i64: 8, 128>}, {pipeline_mode = #tpu.pipeline_mode<synchronous>, transform_indices = @transform_7, window_bounds = array<i64: 128, 128>}, {pipeline_mode = #tpu.pipeline_mode<synchronous>, transform_indices = @transform_8, window_bounds = array<i64: 8, 8>}, {pipeline_mode = #tpu.pipeline_mode<synchronous>, transform_indices = @transform_9, window_bounds = array<i64: 8, 1>}, {pipeline_mode = #tpu.pipeline_mode<synchronous>, transform_indices = @transform_10, window_bounds = array<i64: 2, 8>}, {pipeline_mode = #tpu.pipeline_mode<synchronous>, transform_indices = @transform_11, window_bounds = array<i64: 2, 1>}, {transform_indices = @transform_12, window_bounds = array<i64: 2, 2, 128>}]} {
    %c0 = arith.constant 0 : index
    %c0_0 = arith.constant 0 : index
    %0 = vector.load %arg8[%c0, %c0_0] : memref<128x128xf32, #tpu.memory_space<vmem>>, vector<128x128xf32>
    %c0_1 = arith.constant 0 : index
    %c0_2 = arith.constant 0 : index
    %1 = vector.load %arg6[%c0_1, %c0_2] : memref<8x128xf32, #tpu.memory_space<vmem>>, vector<8x128xf32>
    %c0_3 = arith.constant 0 : index
    %c0_4 = arith.constant 0 : index
    %2 = vector.load %arg7[%c0_3, %c0_4] : memref<8x128xf32, #tpu.memory_space<vmem>>, vector<8x128xf32>
    %c0_5 = arith.constant 0 : index
    %c0_6 = arith.constant 0 : index
    %3 = vector.load %arg9[%c0_5, %c0_6] : memref<8x8xf32, #tpu.memory_space<vmem>>, vector<8x8xf32>
    %c0_7 = arith.constant 0 : index
    %c0_8 = arith.constant 0 : index
    %4 = vector.load %arg11[%c0_7, %c0_8] : memref<2x8xf32, #tpu.memory_space<vmem>>, vector<2x8xf32>
    %cst = arith.constant 0.000000e+00 : f32
    %5 = vector.broadcast %cst : f32 to vector<8x128xf32>
    %cst_9 = arith.constant 0.000000e+00 : f32
    %6 = vector.broadcast %cst_9 : f32 to vector<8x128xf32>
    %c0_10 = arith.constant 0 : index
    %c0_11 = arith.constant 0 : index
    %c0_12 = arith.constant 0 : index
    %c0_13 = arith.constant 0 : index
    %7 = vector.load %arg1[%c0_10, %c0_11, %c0_12, %c0_13] : memref<2x3x8x128xf32, #tpu.memory_space<vmem>>, vector<1x1x8x128xf32>
    %8 = vector.shape_cast %7 : vector<1x1x8x128xf32> to vector<8x128xf32>
    %c0_14 = arith.constant 0 : index
    %c0_15 = arith.constant 0 : index
    %c0_16 = arith.constant 0 : index
    %9 = vector.load %arg2[%c0_14, %c0_15, %c0_16] : memref<3x8x8xf32, #tpu.memory_space<vmem>>, vector<1x8x8xf32>
    %10 = vector.shape_cast %9 : vector<1x8x8xf32> to vector<8x8xf32>
    %cst_17 = arith.constant dense<0.000000e+00> : vector<8x128xf32>
    %11 = tpu.matmul %10, %8, %cst_17 {dimension_numbers = #tpu.dot_dimension_numbers<[1], [0], [0], [1], [0, 0, 1, 1], [], []>} : vector<8x8xf32>, vector<8x128xf32>, vector<8x128xf32> -> vector<8x128xf32>
    %12 = arith.addf %5, %11 : vector<8x128xf32>
    %c0_18 = arith.constant 0 : index
    %c0_19 = arith.constant 0 : index
    %c0_20 = arith.constant 0 : index
    %13 = vector.load %arg3[%c0_18, %c0_19, %c0_20] : memref<3x8x8xf32, #tpu.memory_space<vmem>>, vector<1x8x8xf32>
    %14 = vector.shape_cast %13 : vector<1x8x8xf32> to vector<8x8xf32>
    %cst_21 = arith.constant dense<0.000000e+00> : vector<8x128xf32>
    %15 = tpu.matmul %14, %8, %cst_21 {dimension_numbers = #tpu.dot_dimension_numbers<[1], [0], [0], [1], [0, 0, 1, 1], [], []>} : vector<8x8xf32>, vector<8x128xf32>, vector<8x128xf32> -> vector<8x128xf32>
    %16 = arith.addf %6, %15 : vector<8x128xf32>
    %c0_22 = arith.constant 0 : index
    %c1 = arith.constant 1 : index
    %c0_23 = arith.constant 0 : index
    %c0_24 = arith.constant 0 : index
    %17 = vector.load %arg1[%c0_22, %c1, %c0_23, %c0_24] : memref<2x3x8x128xf32, #tpu.memory_space<vmem>>, vector<1x1x8x128xf32>
    %18 = vector.shape_cast %17 : vector<1x1x8x128xf32> to vector<8x128xf32>
    %c1_25 = arith.constant 1 : index
    %c0_26 = arith.constant 0 : index
    %c0_27 = arith.constant 0 : index
    %19 = vector.load %arg2[%c1_25, %c0_26, %c0_27] : memref<3x8x8xf32, #tpu.memory_space<vmem>>, vector<1x8x8xf32>
    %20 = vector.shape_cast %19 : vector<1x8x8xf32> to vector<8x8xf32>
    %cst_28 = arith.constant dense<0.000000e+00> : vector<8x128xf32>
    %21 = tpu.matmul %20, %18, %cst_28 {dimension_numbers = #tpu.dot_dimension_numbers<[1], [0], [0], [1], [0, 0, 1, 1], [], []>} : vector<8x8xf32>, vector<8x128xf32>, vector<8x128xf32> -> vector<8x128xf32>
    %22 = arith.addf %12, %21 : vector<8x128xf32>
    %c1_29 = arith.constant 1 : index
    %c0_30 = arith.constant 0 : index
    %c0_31 = arith.constant 0 : index
    %23 = vector.load %arg3[%c1_29, %c0_30, %c0_31] : memref<3x8x8xf32, #tpu.memory_space<vmem>>, vector<1x8x8xf32>
    %24 = vector.shape_cast %23 : vector<1x8x8xf32> to vector<8x8xf32>
    %cst_32 = arith.constant dense<0.000000e+00> : vector<8x128xf32>
    %25 = tpu.matmul %24, %18, %cst_32 {dimension_numbers = #tpu.dot_dimension_numbers<[1], [0], [0], [1], [0, 0, 1, 1], [], []>} : vector<8x8xf32>, vector<8x128xf32>, vector<8x128xf32> -> vector<8x128xf32>
    %26 = arith.addf %16, %25 : vector<8x128xf32>
    %c0_33 = arith.constant 0 : index
    %c2 = arith.constant 2 : index
    %c0_34 = arith.constant 0 : index
    %c0_35 = arith.constant 0 : index
    %27 = vector.load %arg1[%c0_33, %c2, %c0_34, %c0_35] : memref<2x3x8x128xf32, #tpu.memory_space<vmem>>, vector<1x1x8x128xf32>
    %28 = vector.shape_cast %27 : vector<1x1x8x128xf32> to vector<8x128xf32>
    %c2_36 = arith.constant 2 : index
    %c0_37 = arith.constant 0 : index
    %c0_38 = arith.constant 0 : index
    %29 = vector.load %arg2[%c2_36, %c0_37, %c0_38] : memref<3x8x8xf32, #tpu.memory_space<vmem>>, vector<1x8x8xf32>
    %30 = vector.shape_cast %29 : vector<1x8x8xf32> to vector<8x8xf32>
    %cst_39 = arith.constant dense<0.000000e+00> : vector<8x128xf32>
    %31 = tpu.matmul %30, %28, %cst_39 {dimension_numbers = #tpu.dot_dimension_numbers<[1], [0], [0], [1], [0, 0, 1, 1], [], []>} : vector<8x8xf32>, vector<8x128xf32>, vector<8x128xf32> -> vector<8x128xf32>
    %32 = arith.addf %22, %31 : vector<8x128xf32>
    %c2_40 = arith.constant 2 : index
    %c0_41 = arith.constant 0 : index
    %c0_42 = arith.constant 0 : index
    %33 = vector.load %arg3[%c2_40, %c0_41, %c0_42] : memref<3x8x8xf32, #tpu.memory_space<vmem>>, vector<1x8x8xf32>
    %34 = vector.shape_cast %33 : vector<1x8x8xf32> to vector<8x8xf32>
    %cst_43 = arith.constant dense<0.000000e+00> : vector<8x128xf32>
    %35 = tpu.matmul %34, %28, %cst_43 {dimension_numbers = #tpu.dot_dimension_numbers<[1], [0], [0], [1], [0, 0, 1, 1], [], []>} : vector<8x8xf32>, vector<8x128xf32>, vector<8x128xf32> -> vector<8x128xf32>
    %36 = arith.addf %26, %35 : vector<8x128xf32>
    %c0_44 = arith.constant 0 : index
    %c0_45 = arith.constant 0 : index
    %37 = vector.load %arg4[%c0_44, %c0_45] : memref<8x1xf32, #tpu.memory_space<vmem>>, vector<8x1xf32>
    %38 = vector.broadcast %37 : vector<8x1xf32> to vector<8x128xf32>
    %39 = arith.addf %32, %38 : vector<8x128xf32>
    %c0_46 = arith.constant 0 : index
    %c0_47 = arith.constant 0 : index
    %40 = vector.load %arg5[%c0_46, %c0_47] : memref<8x1xf32, #tpu.memory_space<vmem>>, vector<8x1xf32>
    %41 = vector.broadcast %40 : vector<8x1xf32> to vector<8x128xf32>
    %42 = arith.addf %36, %41 : vector<8x128xf32>
    %c0_48 = arith.constant 0 : index
    %c1_49 = arith.constant 1 : index
    %c0_50 = arith.constant 0 : index
    %c0_51 = arith.constant 0 : index
    %43 = vector.load %arg1[%c0_48, %c1_49, %c0_50, %c0_51] : memref<2x3x8x128xf32, #tpu.memory_space<vmem>>, vector<1x1x8x128xf32>
    %44 = vector.shape_cast %43 : vector<1x1x8x128xf32> to vector<8x128xf32>
    %45 = arith.addf %39, %44 : vector<8x128xf32>
    %46 = arith.negf %42 : vector<8x128xf32>
    %47 = math.exp %46 : vector<8x128xf32>
    %cst_52 = arith.constant 1.000000e+00 : f32
    %48 = vector.broadcast %cst_52 : f32 to vector<8x128xf32>
    %49 = arith.addf %48, %47 : vector<8x128xf32>
    %50 = arith.divf %48, %49 : vector<8x128xf32>
    %51 = arith.mulf %45, %50 : vector<8x128xf32>
    %cst_53 = arith.constant dense<0.000000e+00> : vector<128xf32>
    %52 = vector.multi_reduction <add>, %51, %cst_53 [0] : vector<8x128xf32> to vector<128xf32>
    %53 = vector.shape_cast %52 : vector<128xf32> to vector<1x128xf32>
    %cst_54 = arith.constant dense<0.000000e+00> : vector<1x128xf32>
    %54 = tpu.matmul %53, %0, %cst_54 {dimension_numbers = #tpu.dot_dimension_numbers<[1], [0], [0], [1], [0, 0, 1, 1], [], []>} : vector<1x128xf32>, vector<128x128xf32>, vector<1x128xf32> -> vector<1x128xf32>
    %cst_55 = arith.constant 7.812500e-03 : f32
    %55 = vector.broadcast %cst_55 : f32 to vector<1x128xf32>
    %56 = arith.mulf %54, %55 : vector<1x128xf32>
    %57 = vector.broadcast %56 : vector<1x128xf32> to vector<8x128xf32>
    %58 = arith.subf %51, %57 : vector<8x128xf32>
    %59 = arith.mulf %58, %58 : vector<8x128xf32>
    %cst_56 = arith.constant dense<0.000000e+00> : vector<128xf32>
    %60 = vector.multi_reduction <add>, %59, %cst_56 [0] : vector<8x128xf32> to vector<128xf32>
    %61 = vector.shape_cast %60 : vector<128xf32> to vector<1x128xf32>
    %cst_57 = arith.constant dense<0.000000e+00> : vector<1x128xf32>
    %62 = tpu.matmul %61, %0, %cst_57 {dimension_numbers = #tpu.dot_dimension_numbers<[1], [0], [0], [1], [0, 0, 1, 1], [], []>} : vector<1x128xf32>, vector<128x128xf32>, vector<1x128xf32> -> vector<1x128xf32>
    %cst_58 = arith.constant 7.812500e-03 : f32
    %63 = vector.broadcast %cst_58 : f32 to vector<1x128xf32>
    %64 = arith.mulf %62, %63 : vector<1x128xf32>
    %cst_59 = arith.constant 9.99999974E-6 : f32
    %65 = vector.broadcast %cst_59 : f32 to vector<1x128xf32>
    %66 = arith.addf %64, %65 : vector<1x128xf32>
    %67 = math.rsqrt %66 : vector<1x128xf32>
    %68 = vector.broadcast %67 : vector<1x128xf32> to vector<8x128xf32>
    %69 = arith.mulf %58, %68 : vector<8x128xf32>
    %70 = arith.mulf %69, %1 : vector<8x128xf32>
    %71 = arith.addf %70, %2 : vector<8x128xf32>
    %cst_60 = arith.constant dense<0.000000e+00> : vector<8x128xf32>
    %72 = tpu.matmul %3, %71, %cst_60 {dimension_numbers = #tpu.dot_dimension_numbers<[1], [0], [0], [1], [0, 0, 1, 1], [], []>} : vector<8x8xf32>, vector<8x128xf32>, vector<8x128xf32> -> vector<8x128xf32>
    %c0_61 = arith.constant 0 : index
    %c0_62 = arith.constant 0 : index
    %73 = vector.load %arg10[%c0_61, %c0_62] : memref<8x1xf32, #tpu.memory_space<vmem>>, vector<8x1xf32>
    %74 = vector.broadcast %73 : vector<8x1xf32> to vector<8x128xf32>
    %75 = arith.addf %72, %74 : vector<8x128xf32>
    %76 = arith.addf %75, %71 : vector<8x128xf32>
    %77 = arith.negf %76 : vector<8x128xf32>
    %78 = math.exp %77 : vector<8x128xf32>
    %cst_63 = arith.constant 1.000000e+00 : f32
    %79 = vector.broadcast %cst_63 : f32 to vector<8x128xf32>
    %80 = arith.addf %79, %78 : vector<8x128xf32>
    %81 = arith.divf %79, %80 : vector<8x128xf32>
    %cst_64 = arith.constant dense<0.000000e+00> : vector<2x128xf32>
    %82 = tpu.matmul %4, %81, %cst_64 {dimension_numbers = #tpu.dot_dimension_numbers<[1], [0], [0], [1], [0, 0, 1, 1], [], []>} : vector<2x8xf32>, vector<8x128xf32>, vector<2x128xf32> -> vector<2x128xf32>
    %c0_65 = arith.constant 0 : index
    %c0_66 = arith.constant 0 : index
    %83 = vector.load %arg12[%c0_65, %c0_66] : memref<2x1xf32, #tpu.memory_space<vmem>>, vector<2x1xf32>
    %84 = vector.broadcast %83 : vector<2x1xf32> to vector<2x128xf32>
    %85 = arith.addf %82, %84 : vector<2x128xf32>
    %c0_67 = arith.constant 0 : index
    %c0_68 = arith.constant 0 : index
    %c0_69 = arith.constant 0 : index
    %86 = vector.load %arg13[%c0_67, %c0_68, %c0_69] : memref<2x2x128xf32, #tpu.memory_space<vmem>>, vector<1x2x128xf32>
    %87 = vector.shape_cast %86 : vector<1x2x128xf32> to vector<2x128xf32>
    %88 = vector.shape_cast %85 : vector<2x128xf32> to vector<1x2x128xf32>
    tpu.vector_store %arg13[%c0_67, %c0_68, %c0_69], %88 {strides = array<i32>} : memref<2x2x128xf32, #tpu.memory_space<vmem>>, vector<1x2x128xf32>,
    %cst_70 = arith.constant 0.000000e+00 : f32
    %89 = vector.broadcast %cst_70 : f32 to vector<8x128xf32>
    %cst_71 = arith.constant 0.000000e+00 : f32
    %90 = vector.broadcast %cst_71 : f32 to vector<8x128xf32>
    %c1_72 = arith.constant 1 : index
    %c0_73 = arith.constant 0 : index
    %c0_74 = arith.constant 0 : index
    %c0_75 = arith.constant 0 : index
    %91 = vector.load %arg1[%c1_72, %c0_73, %c0_74, %c0_75] : memref<2x3x8x128xf32, #tpu.memory_space<vmem>>, vector<1x1x8x128xf32>
    %92 = vector.shape_cast %91 : vector<1x1x8x128xf32> to vector<8x128xf32>
    %c0_76 = arith.constant 0 : index
    %c0_77 = arith.constant 0 : index
    %c0_78 = arith.constant 0 : index
    %93 = vector.load %arg2[%c0_76, %c0_77, %c0_78] : memref<3x8x8xf32, #tpu.memory_space<vmem>>, vector<1x8x8xf32>
    %94 = vector.shape_cast %93 : vector<1x8x8xf32> to vector<8x8xf32>
    %cst_79 = arith.constant dense<0.000000e+00> : vector<8x128xf32>
    %95 = tpu.matmul %94, %92, %cst_79 {dimension_numbers = #tpu.dot_dimension_numbers<[1], [0], [0], [1], [0, 0, 1, 1], [], []>} : vector<8x8xf32>, vector<8x128xf32>, vector<8x128xf32> -> vector<8x128xf32>
    %96 = arith.addf %89, %95 : vector<8x128xf32>
    %c0_80 = arith.constant 0 : index
    %c0_81 = arith.constant 0 : index
    %c0_82 = arith.constant 0 : index
    %97 = vector.load %arg3[%c0_80, %c0_81, %c0_82] : memref<3x8x8xf32, #tpu.memory_space<vmem>>, vector<1x8x8xf32>
    %98 = vector.shape_cast %97 : vector<1x8x8xf32> to vector<8x8xf32>
    %cst_83 = arith.constant dense<0.000000e+00> : vector<8x128xf32>
    %99 = tpu.matmul %98, %92, %cst_83 {dimension_numbers = #tpu.dot_dimension_numbers<[1], [0], [0], [1], [0, 0, 1, 1], [], []>} : vector<8x8xf32>, vector<8x128xf32>, vector<8x128xf32> -> vector<8x128xf32>
    %100 = arith.addf %90, %99 : vector<8x128xf32>
    %c1_84 = arith.constant 1 : index
    %c1_85 = arith.constant 1 : index
    %c0_86 = arith.constant 0 : index
    %c0_87 = arith.constant 0 : index
    %101 = vector.load %arg1[%c1_84, %c1_85, %c0_86, %c0_87] : memref<2x3x8x128xf32, #tpu.memory_space<vmem>>, vector<1x1x8x128xf32>
    %102 = vector.shape_cast %101 : vector<1x1x8x128xf32> to vector<8x128xf32>
    %c1_88 = arith.constant 1 : index
    %c0_89 = arith.constant 0 : index
    %c0_90 = arith.constant 0 : index
    %103 = vector.load %arg2[%c1_88, %c0_89, %c0_90] : memref<3x8x8xf32, #tpu.memory_space<vmem>>, vector<1x8x8xf32>
    %104 = vector.shape_cast %103 : vector<1x8x8xf32> to vector<8x8xf32>
    %cst_91 = arith.constant dense<0.000000e+00> : vector<8x128xf32>
    %105 = tpu.matmul %104, %102, %cst_91 {dimension_numbers = #tpu.dot_dimension_numbers<[1], [0], [0], [1], [0, 0, 1, 1], [], []>} : vector<8x8xf32>, vector<8x128xf32>, vector<8x128xf32> -> vector<8x128xf32>
    %106 = arith.addf %96, %105 : vector<8x128xf32>
    %c1_92 = arith.constant 1 : index
    %c0_93 = arith.constant 0 : index
    %c0_94 = arith.constant 0 : index
    %107 = vector.load %arg3[%c1_92, %c0_93, %c0_94] : memref<3x8x8xf32, #tpu.memory_space<vmem>>, vector<1x8x8xf32>
    %108 = vector.shape_cast %107 : vector<1x8x8xf32> to vector<8x8xf32>
    %cst_95 = arith.constant dense<0.000000e+00> : vector<8x128xf32>
    %109 = tpu.matmul %108, %102, %cst_95 {dimension_numbers = #tpu.dot_dimension_numbers<[1], [0], [0], [1], [0, 0, 1, 1], [], []>} : vector<8x8xf32>, vector<8x128xf32>, vector<8x128xf32> -> vector<8x128xf32>
    %110 = arith.addf %100, %109 : vector<8x128xf32>
    %c1_96 = arith.constant 1 : index
    %c2_97 = arith.constant 2 : index
    %c0_98 = arith.constant 0 : index
    %c0_99 = arith.constant 0 : index
    %111 = vector.load %arg1[%c1_96, %c2_97, %c0_98, %c0_99] : memref<2x3x8x128xf32, #tpu.memory_space<vmem>>, vector<1x1x8x128xf32>
    %112 = vector.shape_cast %111 : vector<1x1x8x128xf32> to vector<8x128xf32>
    %c2_100 = arith.constant 2 : index
    %c0_101 = arith.constant 0 : index
    %c0_102 = arith.constant 0 : index
    %113 = vector.load %arg2[%c2_100, %c0_101, %c0_102] : memref<3x8x8xf32, #tpu.memory_space<vmem>>, vector<1x8x8xf32>
    %114 = vector.shape_cast %113 : vector<1x8x8xf32> to vector<8x8xf32>
    %cst_103 = arith.constant dense<0.000000e+00> : vector<8x128xf32>
    %115 = tpu.matmul %114, %112, %cst_103 {dimension_numbers = #tpu.dot_dimension_numbers<[1], [0], [0], [1], [0, 0, 1, 1], [], []>} : vector<8x8xf32>, vector<8x128xf32>, vector<8x128xf32> -> vector<8x128xf32>
    %116 = arith.addf %106, %115 : vector<8x128xf32>
    %c2_104 = arith.constant 2 : index
    %c0_105 = arith.constant 0 : index
    %c0_106 = arith.constant 0 : index
    %117 = vector.load %arg3[%c2_104, %c0_105, %c0_106] : memref<3x8x8xf32, #tpu.memory_space<vmem>>, vector<1x8x8xf32>
    %118 = vector.shape_cast %117 : vector<1x8x8xf32> to vector<8x8xf32>
    %cst_107 = arith.constant dense<0.000000e+00> : vector<8x128xf32>
    %119 = tpu.matmul %118, %112, %cst_107 {dimension_numbers = #tpu.dot_dimension_numbers<[1], [0], [0], [1], [0, 0, 1, 1], [], []>} : vector<8x8xf32>, vector<8x128xf32>, vector<8x128xf32> -> vector<8x128xf32>
    %120 = arith.addf %110, %119 : vector<8x128xf32>
    %c0_108 = arith.constant 0 : index
    %c0_109 = arith.constant 0 : index
    %121 = vector.load %arg4[%c0_108, %c0_109] : memref<8x1xf32, #tpu.memory_space<vmem>>, vector<8x1xf32>
    %122 = vector.broadcast %121 : vector<8x1xf32> to vector<8x128xf32>
    %123 = arith.addf %116, %122 : vector<8x128xf32>
    %c0_110 = arith.constant 0 : index
    %c0_111 = arith.constant 0 : index
    %124 = vector.load %arg5[%c0_110, %c0_111] : memref<8x1xf32, #tpu.memory_space<vmem>>, vector<8x1xf32>
    %125 = vector.broadcast %124 : vector<8x1xf32> to vector<8x128xf32>
    %126 = arith.addf %120, %125 : vector<8x128xf32>
    %c1_112 = arith.constant 1 : index
    %c1_113 = arith.constant 1 : index
    %c0_114 = arith.constant 0 : index
    %c0_115 = arith.constant 0 : index
    %127 = vector.load %arg1[%c1_112, %c1_113, %c0_114, %c0_115] : memref<2x3x8x128xf32, #tpu.memory_space<vmem>>, vector<1x1x8x128xf32>
    %128 = vector.shape_cast %127 : vector<1x1x8x128xf32> to vector<8x128xf32>
    %129 = arith.addf %123, %128 : vector<8x128xf32>
    %130 = arith.negf %126 : vector<8x128xf32>
    %131 = math.exp %130 : vector<8x128xf32>
    %cst_116 = arith.constant 1.000000e+00 : f32
    %132 = vector.broadcast %cst_116 : f32 to vector<8x128xf32>
    %133 = arith.addf %132, %131 : vector<8x128xf32>
    %134 = arith.divf %132, %133 : vector<8x128xf32>
    %135 = arith.mulf %129, %134 : vector<8x128xf32>
    %cst_117 = arith.constant dense<0.000000e+00> : vector<128xf32>
    %136 = vector.multi_reduction <add>, %135, %cst_117 [0] : vector<8x128xf32> to vector<128xf32>
    %137 = vector.shape_cast %136 : vector<128xf32> to vector<1x128xf32>
    %cst_118 = arith.constant dense<0.000000e+00> : vector<1x128xf32>
    %138 = tpu.matmul %137, %0, %cst_118 {dimension_numbers = #tpu.dot_dimension_numbers<[1], [0], [0], [1], [0, 0, 1, 1], [], []>} : vector<1x128xf32>, vector<128x128xf32>, vector<1x128xf32> -> vector<1x128xf32>
    %cst_119 = arith.constant 7.812500e-03 : f32
    %139 = vector.broadcast %cst_119 : f32 to vector<1x128xf32>
    %140 = arith.mulf %138, %139 : vector<1x128xf32>
    %141 = vector.broadcast %140 : vector<1x128xf32> to vector<8x128xf32>
    %142 = arith.subf %135, %141 : vector<8x128xf32>
    %143 = arith.mulf %142, %142 : vector<8x128xf32>
    %cst_120 = arith.constant dense<0.000000e+00> : vector<128xf32>
    %144 = vector.multi_reduction <add>, %143, %cst_120 [0] : vector<8x128xf32> to vector<128xf32>
    %145 = vector.shape_cast %144 : vector<128xf32> to vector<1x128xf32>
    %cst_121 = arith.constant dense<0.000000e+00> : vector<1x128xf32>
    %146 = tpu.matmul %145, %0, %cst_121 {dimension_numbers = #tpu.dot_dimension_numbers<[1], [0], [0], [1], [0, 0, 1, 1], [], []>} : vector<1x128xf32>, vector<128x128xf32>, vector<1x128xf32> -> vector<1x128xf32>
    %cst_122 = arith.constant 7.812500e-03 : f32
    %147 = vector.broadcast %cst_122 : f32 to vector<1x128xf32>
    %148 = arith.mulf %146, %147 : vector<1x128xf32>
    %cst_123 = arith.constant 9.99999974E-6 : f32
    %149 = vector.broadcast %cst_123 : f32 to vector<1x128xf32>
    %150 = arith.addf %148, %149 : vector<1x128xf32>
    %151 = math.rsqrt %150 : vector<1x128xf32>
    %152 = vector.broadcast %151 : vector<1x128xf32> to vector<8x128xf32>
    %153 = arith.mulf %142, %152 : vector<8x128xf32>
    %154 = arith.mulf %153, %1 : vector<8x128xf32>
    %155 = arith.addf %154, %2 : vector<8x128xf32>
    %cst_124 = arith.constant dense<0.000000e+00> : vector<8x128xf32>
    %156 = tpu.matmul %3, %155, %cst_124 {dimension_numbers = #tpu.dot_dimension_numbers<[1], [0], [0], [1], [0, 0, 1, 1], [], []>} : vector<8x8xf32>, vector<8x128xf32>, vector<8x128xf32> -> vector<8x128xf32>
    %c0_125 = arith.constant 0 : index
    %c0_126 = arith.constant 0 : index
    %157 = vector.load %arg10[%c0_125, %c0_126] : memref<8x1xf32, #tpu.memory_space<vmem>>, vector<8x1xf32>
    %158 = vector.broadcast %157 : vector<8x1xf32> to vector<8x128xf32>
    %159 = arith.addf %156, %158 : vector<8x128xf32>
    %160 = arith.addf %159, %155 : vector<8x128xf32>
    %161 = arith.negf %160 : vector<8x128xf32>
    %162 = math.exp %161 : vector<8x128xf32>
    %cst_127 = arith.constant 1.000000e+00 : f32
    %163 = vector.broadcast %cst_127 : f32 to vector<8x128xf32>
    %164 = arith.addf %163, %162 : vector<8x128xf32>
    %165 = arith.divf %163, %164 : vector<8x128xf32>
    %cst_128 = arith.constant dense<0.000000e+00> : vector<2x128xf32>
    %166 = tpu.matmul %4, %165, %cst_128 {dimension_numbers = #tpu.dot_dimension_numbers<[1], [0], [0], [1], [0, 0, 1, 1], [], []>} : vector<2x8xf32>, vector<8x128xf32>, vector<2x128xf32> -> vector<2x128xf32>
    %c0_129 = arith.constant 0 : index
    %c0_130 = arith.constant 0 : index
    %167 = vector.load %arg12[%c0_129, %c0_130] : memref<2x1xf32, #tpu.memory_space<vmem>>, vector<2x1xf32>
    %168 = vector.broadcast %167 : vector<2x1xf32> to vector<2x128xf32>
    %169 = arith.addf %166, %168 : vector<2x128xf32>
    %c1_131 = arith.constant 1 : index
    %c0_132 = arith.constant 0 : index
    %c0_133 = arith.constant 0 : index
    %170 = vector.load %arg13[%c1_131, %c0_132, %c0_133] : memref<2x2x128xf32, #tpu.memory_space<vmem>>, vector<1x2x128xf32>
    %171 = vector.shape_cast %170 : vector<1x2x128xf32> to vector<2x128xf32>
    %172 = vector.shape_cast %169 : vector<2x128xf32> to vector<1x2x128xf32>
    tpu.vector_store %arg13[%c1_131, %c0_132, %c0_133], %172 {strides = array<i32>} : memref<2x2x128xf32, #tpu.memory_space<vmem>>, vector<1x2x128xf32>,
    return
  }
  func.func @transform_0(%arg0: i32) -> (i32, i32, i32, i32) {
    %c0_i32 = arith.constant 0 : i32
    %c0_i32_0 = arith.constant 0 : i32
    %c0_i32_1 = arith.constant 0 : i32
    %c0_i32_2 = arith.constant 0 : i32
    return %arg0, %c0_i32, %c0_i32_0, %c0_i32_1 : i32, i32, i32, i32
  }
  func.func @transform_1(%arg0: i32) -> (i32, i32, i32) {
    %c0_i32 = arith.constant 0 : i32
    %c0_i32_0 = arith.constant 0 : i32
    %c0_i32_1 = arith.constant 0 : i32
    %c0_i32_2 = arith.constant 0 : i32
    return %c0_i32, %c0_i32_0, %c0_i32_1 : i32, i32, i32
  }
  func.func @transform_2(%arg0: i32) -> (i32, i32, i32) {
    %c0_i32 = arith.constant 0 : i32
    %c0_i32_0 = arith.constant 0 : i32
    %c0_i32_1 = arith.constant 0 : i32
    %c0_i32_2 = arith.constant 0 : i32
    return %c0_i32, %c0_i32_0, %c0_i32_1 : i32, i32, i32
  }
  func.func @transform_3(%arg0: i32) -> (i32, i32) {
    %c0_i32 = arith.constant 0 : i32
    %c0_i32_0 = arith.constant 0 : i32
    %c0_i32_1 = arith.constant 0 : i32
    return %c0_i32, %c0_i32_0 : i32, i32
  }
  func.func @transform_4(%arg0: i32) -> (i32, i32) {
    %c0_i32 = arith.constant 0 : i32
    %c0_i32_0 = arith.constant 0 : i32
    %c0_i32_1 = arith.constant 0 : i32
    return %c0_i32, %c0_i32_0 : i32, i32
  }
  func.func @transform_5(%arg0: i32) -> (i32, i32) {
    %c0_i32 = arith.constant 0 : i32
    %c0_i32_0 = arith.constant 0 : i32
    %c0_i32_1 = arith.constant 0 : i32
    return %c0_i32, %c0_i32_0 : i32, i32
  }
  func.func @transform_6(%arg0: i32) -> (i32, i32) {
    %c0_i32 = arith.constant 0 : i32
    %c0_i32_0 = arith.constant 0 : i32
    %c0_i32_1 = arith.constant 0 : i32
    return %c0_i32, %c0_i32_0 : i32, i32
  }
  func.func @transform_7(%arg0: i32) -> (i32, i32) {
    %c0_i32 = arith.constant 0 : i32
    %c0_i32_0 = arith.constant 0 : i32
    %c0_i32_1 = arith.constant 0 : i32
    return %c0_i32, %c0_i32_0 : i32, i32
  }
  func.func @transform_8(%arg0: i32) -> (i32, i32) {
    %c0_i32 = arith.constant 0 : i32
    %c0_i32_0 = arith.constant 0 : i32
    %c0_i32_1 = arith.constant 0 : i32
    return %c0_i32, %c0_i32_0 : i32, i32
  }
  func.func @transform_9(%arg0: i32) -> (i32, i32) {
    %c0_i32 = arith.constant 0 : i32
    %c0_i32_0 = arith.constant 0 : i32
    %c0_i32_1 = arith.constant 0 : i32
    return %c0_i32, %c0_i32_0 : i32, i32
  }
  func.func @transform_10(%arg0: i32) -> (i32, i32) {
    %c0_i32 = arith.constant 0 : i32
    %c0_i32_0 = arith.constant 0 : i32
    %c0_i32_1 = arith.constant 0 : i32
    return %c0_i32, %c0_i32_0 : i32, i32
  }
  func.func @transform_11(%arg0: i32) -> (i32, i32) {
    %c0_i32 = arith.constant 0 : i32
    %c0_i32_0 = arith.constant 0 : i32
    %c0_i32_1 = arith.constant 0 : i32
    return %c0_i32, %c0_i32_0 : i32, i32
  }
  func.func @transform_12(%arg0: i32) -> (i32, i32, i32) {
    %c0_i32 = arith.constant 0 : i32
    %c0_i32_0 = arith.constant 0 : i32
    %c0_i32_1 = arith.constant 0 : i32
    return %arg0, %c0_i32, %c0_i32_0 : i32, i32, i32
  }
}

</mosaic_0001>

<llo_original>
// kernel: tpu_custom_call.1
$region0: #{tpu_custom_call.1}
  #allocation0 [shape = 'u32[]', space=smem, size = 0x4, offset = 0x4, fixed_abs, tag = 'smem constant byte address 0x4 - core index']
  #allocation1 [shape = 'u32[72,128]{1,0:T(1,128)}', space=vmem, size = 0x9000, scoped, tag = 'internal scratch']
  %s0 = inlined_call_operand.hbm [shape: f32[2,3,8,128], index: 0, kind: input, shape index: {}]
  %s1 = inlined_call_operand.hbm [shape: f32[3,8,8], index: 1, kind: input, shape index: {}]
  %s2 = inlined_call_operand.hbm [shape: f32[3,8,8], index: 2, kind: input, shape index: {}]
  %s3 = inlined_call_operand.vmem [shape: f32[8,1], index: 3, kind: input, shape index: {}]
  %s4 = inlined_call_operand.vmem [shape: f32[8,1], index: 4, kind: input, shape index: {}]
  %s5 = inlined_call_operand.vmem [shape: f32[8,128], index: 5, kind: input, shape index: {}]
  %s6 = inlined_call_operand.vmem [shape: f32[8,128], index: 6, kind: input, shape index: {}]
  %s7 = inlined_call_operand.hbm [shape: f32[128,128], index: 7, kind: input, shape index: {}]
  %s8 = inlined_call_operand.vmem [shape: f32[8,8], index: 8, kind: input, shape index: {}]
  %s9 = inlined_call_operand.vmem [shape: f32[8,1], index: 9, kind: input, shape index: {}]
  %s10 = inlined_call_operand.vmem [shape: f32[2,8], index: 10, kind: input, shape index: {}]
  %s11 = inlined_call_operand.vmem [shape: f32[2,1], index: 11, kind: input, shape index: {}]
  %s12 = inlined_call_operand.hbm [shape: f32[2,2,128], index: 12, kind: output, shape index: {}]
  %s13 = sld [smem:[#allocation0]]
  $region74: #{tpu_custom_call.1} parent=0
    _
  %s15 = ssub.s32 1, %s13
  %s16 = scalar_select 0, %s15, %s13
  $region1: #{tpu_custom_call.1} parent=0
    #allocation2 [shape = 'u8[24576]{0}', space=vmem, size = 0x6000, scoped, tag = 'input window, operand 0, single buffered']
    #allocation3 [shape = 's32[1]{0}', space=sflag, size = 0x4, scoped, tag = 'scoped memory for tpu_custom_call.1']
    #allocation4 [shape = 's32[1]{0}', space=sflag, size = 0x4, scoped, tag = 'scoped memory for tpu_custom_call.1']
    #allocation5 [shape = 'u8[12288]{0}', space=vmem, size = 0x3000, scoped, tag = 'input window, operand 1, single buffered']
    #allocation6 [shape = 's32[1]{0}', space=sflag, size = 0x4, scoped, tag = 'scoped memory for tpu_custom_call.1']
    #allocation7 [shape = 'u8[12288]{0}', space=vmem, size = 0x3000, scoped, tag = 'input window, operand 2, single buffered']
    #allocation8 [shape = 'u8[65536]{0}', space=vmem, size = 0x10000, scoped, tag = 'input window, operand 7, single buffered']
    #allocation9 [shape = 's32[1]{0}', space=sflag, size = 0x4, scoped, tag = 'scoped memory for tpu_custom_call.1']
    #allocation10 [shape = 'u8[2048]{0}', space=vmem, size = 0x800, scoped, tag = 'output window, operand 0, single buffered']
    %17 = vsyncpa [#allocation3], 0
    %18 = vsyncpa [#allocation6], 0
    %19 = vsyncpa [#allocation9], 0
    %20 = vsyncpa [#allocation4], 0
    // Predicated region
    $region2: #{tpu_custom_call.1} parent=1 // pred_check
      _
    $region3: #{tpu_custom_call.1} parent=1 // pred_check_branch
      %22 = sbr.rel (0) target = $region5
    $region4: #{tpu_custom_call.1} parent=1 // pred_region
      %24 = vsyncadd [#allocation3], 0
      %s25 = sshll.u32 %s0, 4
      %s26 = int_to_ptr.hbm [resolvable:$true] %s25
      %s27 = sshll.u32 [#allocation2], 4
      %s28 = int_to_ptr.vmem [resolvable:$true] %s27
      %33 = dma.hbm_to_vmem [thread:$0]  %s26, 768, %s28, [#allocation3], 128, 128, 8
    $region5: #{tpu_custom_call.1} parent=1 // pred_fallthru
      _
    // Predicated region
    $region6: #{tpu_custom_call.1} parent=1 // pred_check
      _
    $region7: #{tpu_custom_call.1} parent=1 // pred_check_branch
      %35 = sbr.rel (0) target = $region9
    $region8: #{tpu_custom_call.1} parent=1 // pred_region
      %37 = vsyncadd [#allocation6], 0
      %s38 = sshll.u32 %s1, 4
      %s39 = int_to_ptr.hbm [resolvable:$true] %s38
      %s40 = sshll.u32 [#allocation5], 4
      %s41 = int_to_ptr.vmem [resolvable:$true] %s40
      %46 = dma.hbm_to_vmem [thread:$0]  %s39, 384, %s41, [#allocation6], 128, 128, 8
    $region9: #{tpu_custom_call.1} parent=1 // pred_fallthru
      _
    // Predicated region
    $region10: #{tpu_custom_call.1} parent=1 // pred_check
      _
    $region11: #{tpu_custom_call.1} parent=1 // pred_check_branch
      %48 = sbr.rel (0) target = $region13
    $region12: #{tpu_custom_call.1} parent=1 // pred_region
      %50 = vsyncadd [#allocation6], 0
      %s51 = sshll.u32 %s2, 4
      %s52 = int_to_ptr.hbm [resolvable:$true] %s51
      %s53 = sshll.u32 [#allocation7], 4
      %s54 = int_to_ptr.vmem [resolvable:$true] %s53
      %59 = dma.hbm_to_vmem [thread:$0]  %s52, 384, %s54, [#allocation6], 128, 128, 8
    $region13: #{tpu_custom_call.1} parent=1 // pred_fallthru
      _
    // Predicated region
    $region14: #{tpu_custom_call.1} parent=1 // pred_check
      _
    $region15: #{tpu_custom_call.1} parent=1 // pred_check_branch
      %61 = sbr.rel (0) target = $region17
    $region16: #{tpu_custom_call.1} parent=1 // pred_region
      _
    $region17: #{tpu_custom_call.1} parent=1 // pred_fallthru
      _
    // Predicated region
    $region18: #{tpu_custom_call.1} parent=1 // pred_check
      _
    $region19: #{tpu_custom_call.1} parent=1 // pred_check_branch
      %63 = sbr.rel (0) target = $region21
    $region20: #{tpu_custom_call.1} parent=1 // pred_region
      _
    $region21: #{tpu_custom_call.1} parent=1 // pred_fallthru
      _
    // Predicated region
    $region22: #{tpu_custom_call.1} parent=1 // pred_check
      _
    $region23: #{tpu_custom_call.1} parent=1 // pred_check_branch
      %65 = sbr.rel (0) target = $region25
    $region24: #{tpu_custom_call.1} parent=1 // pred_region
      _
    $region25: #{tpu_custom_call.1} parent=1 // pred_fallthru
      _
    // Predicated region
    $region26: #{tpu_custom_call.1} parent=1 // pred_check
      _
    $region27: #{tpu_custom_call.1} parent=1 // pred_check_branch
      %67 = sbr.rel (0) target = $region29
    $region28: #{tpu_custom_call.1} parent=1 // pred_region
      _
    $region29: #{tpu_custom_call.1} parent=1 // pred_fallthru
      _
    // Predicated region
    $region30: #{tpu_custom_call.1} parent=1 // pred_check
      _
    $region31: #{tpu_custom_call.1} parent=1 // pred_check_branch
      %69 = sbr.rel (0) target = $region33
    $region32: #{tpu_custom_call.1} parent=1 // pred_region
      %71 = vsyncadd [#allocation9], 0
      %s72 = sshll.u32 %s7, 4
      %s73 = int_to_ptr.hbm [resolvable:$true] %s72
      %s74 = sshll.u32 [#allocation8], 4
      %s75 = int_to_ptr.vmem [resolvable:$true] %s74
      %80 = dma.hbm_to_vmem [thread:$0]  %s73, 2048, %s75, [#allocation9], 128, 128, 8
    $region33: #{tpu_custom_call.1} parent=1 // pred_fallthru
      _
    // Predicated region
    $region34: #{tpu_custom_call.1} parent=1 // pred_check
      _
    $region35: #{tpu_custom_call.1} parent=1 // pred_check_branch
      %82 = sbr.rel (0) target = $region37
    $region36: #{tpu_custom_call.1} parent=1 // pred_region
      _
    $region37: #{tpu_custom_call.1} parent=1 // pred_fallthru
      _
    // Predicated region
    $region38: #{tpu_custom_call.1} parent=1 // pred_check
      _
    $region39: #{tpu_custom_call.1} parent=1 // pred_check_branch
      %84 = sbr.rel (0) target = $region41
    $region40: #{tpu_custom_call.1} parent=1 // pred_region
      _
    $region41: #{tpu_custom_call.1} parent=1 // pred_fallthru
      _
    // Predicated region
    $region42: #{tpu_custom_call.1} parent=1 // pred_check
      _
    $region43: #{tpu_custom_call.1} parent=1 // pred_check_branch
      %86 = sbr.rel (0) target = $region45
    $region44: #{tpu_custom_call.1} parent=1 // pred_region
      _
    $region45: #{tpu_custom_call.1} parent=1 // pred_fallthru
      _
    // Predicated region
    $region46: #{tpu_custom_call.1} parent=1 // pred_check
      _
    $region47: #{tpu_custom_call.1} parent=1 // pred_check_branch
      %88 = sbr.rel (0) target = $region49
    $region48: #{tpu_custom_call.1} parent=1 // pred_region
      _
    $region49: #{tpu_custom_call.1} parent=1 // pred_fallthru
      _
    // Predicated region
    $region50: #{tpu_custom_call.1} parent=1 // pred_check
      _
    $region51: #{tpu_custom_call.1} parent=1 // pred_check_branch
      %90 = sbr.rel (0) target = $region53
    $region52: #{tpu_custom_call.1} parent=1 // pred_region
      %92 = dma.done [#allocation3], 768
    $region53: #{tpu_custom_call.1} parent=1 // pred_fallthru
      _
    // Predicated region
    $region54: #{tpu_custom_call.1} parent=1 // pred_check
      _
    $region55: #{tpu_custom_call.1} parent=1 // pred_check_branch
      %94 = sbr.rel (0) target = $region57
    $region56: #{tpu_custom_call.1} parent=1 // pred_region
      %96 = dma.done [#allocation6], 384
    $region57: #{tpu_custom_call.1} parent=1 // pred_fallthru
      _
    // Predicated region
    $region58: #{tpu_custom_call.1} parent=1 // pred_check
      _
    $region59: #{tpu_custom_call.1} parent=1 // pred_check_branch
      %98 = sbr.rel (0) target = $region61
    $region60: #{tpu_custom_call.1} parent=1 // pred_region
      %100 = dma.done [#allocation6], 384
    $region61: #{tpu_custom_call.1} parent=1 // pred_fallthru
      _
    // Predicated region
    $region62: #{tpu_custom_call.1} parent=1 // pred_check
      _
    $region63: #{tpu_custom_call.1} parent=1 // pred_check_branch
      %102 = sbr.rel (0) target = $region65
    $region64: #{tpu_custom_call.1} parent=1 // pred_region
      %104 = dma.done [#allocation9], 2048
    $region65: #{tpu_custom_call.1} parent=1 // pred_fallthru
      _
    %v105 = vld [vmem:[#allocation8] sm:$0xff]
    %v106 = vld [vmem:[#allocation8 + $0x8] sm:$0xff]
    %v107 = vld [vmem:[#allocation8 + $0x10] sm:$0xff]
    %v108 = vld [vmem:[#allocation8 + $0x18] sm:$0xff]
    %v109 = vld [vmem:[#allocation8 + $0x20] sm:$0xff]
    %v110 = vld [vmem:[#allocation8 + $0x28] sm:$0xff]
    %v111 = vld [vmem:[#allocation8 + $0x30] sm:$0xff]
    %v112 = vld [vmem:[#allocation8 + $0x38] sm:$0xff]
    %v113 = vld [vmem:[#allocation8 + $0x40] sm:$0xff]
    %v114 = vld [vmem:[#allocation8 + $0x48] sm:$0xff]
    %v115 = vld [vmem:[#allocation8 + $0x50] sm:$0xff]
    %v116 = vld [vmem:[#allocation8 + $0x58] sm:$0xff]
    %v117 = vld [vmem:[#allocation8 + $0x60] sm:$0xff]
    %v118 = vld [vmem:[#allocation8 + $0x68] sm:$0xff]
    %v119 = vld [vmem:[#allocation8 + $0x70] sm:$0xff]
    %v120 = vld [vmem:[#allocation8 + $0x78] sm:$0xff]
    %v121 = vld [vmem:[%s5] sm:$0xff]
    %v122 = vld [vmem:[%s6] sm:$0xff]
    %v123 = vld [vmem:[%s8] sm:$0xff]
    %v124 = vld [vmem:[%s10] sm:$0x3]
    %v125 = vld [vmem:[#allocation2] sm:$0xff]
    %v126 = vld [vmem:[#allocation5] sm:$0xff]
    %v127 = vld [vmem:[#allocation7] sm:$0xff]
    %s128 = scalar_lea.vmem [#allocation2], 8
    %v129 = vld [vmem:[%s128] sm:$0xff]
    %s130 = scalar_lea.vmem [#allocation5], 8
    %v131 = vld [vmem:[%s130] sm:$0xff]
    %vm132 = vcmask 64512
    %v134 = vsel %vm132, %v131, 0
    %136 = vmatpush.msra.mxu0 0.0
    %137 = vmatpush.msra.mxu0 0.0
    %138 = vmatpush.msra.mxu0 0.0
    %139 = vmatpush.msra.mxu0 0.0
    %140 = vmatpush.msra.mxu0 0.0
    %141 = vmatpush.msra.mxu0 0.0
    %142 = vmatpush.msra.mxu0 0.0
    %143 = vmatpush.msra.mxu0 0.0
    %144 = vmatpush.msra.mxu0 0.0
    %145 = vmatpush.msra.mxu0 0.0
    %146 = vmatpush.msra.mxu0 0.0
    %147 = vmatpush.msra.mxu0 0.0
    %148 = vmatpush.msra.mxu0 0.0
    %149 = vmatpush.msra.mxu0 0.0
    %150 = vmatpush.msra.mxu0 0.0
    %151 = vmatpush.msra.mxu0 %v129
    %152 = vmatmul.f32.gmra.mxu0 %v134
    %v153 = vpop.f32.mrf.mxu0
    %v154 = vadd.f32 0.0, %v153
    %155 = vdwg.mxu0
    %v157 = vsel %vm132, %v126, 0
    %159 = vmatpush.msra.mxu0 0.0
    %160 = vmatpush.msra.mxu0 0.0
    %161 = vmatpush.msra.mxu0 0.0
    %162 = vmatpush.msra.mxu0 0.0
    %163 = vmatpush.msra.mxu0 0.0
    %164 = vmatpush.msra.mxu0 0.0
    %165 = vmatpush.msra.mxu0 0.0
    %166 = vmatpush.msra.mxu0 0.0
    %167 = vmatpush.msra.mxu0 0.0
    %168 = vmatpush.msra.mxu0 0.0
    %169 = vmatpush.msra.mxu0 0.0
    %170 = vmatpush.msra.mxu0 0.0
    %171 = vmatpush.msra.mxu0 0.0
    %172 = vmatpush.msra.mxu0 0.0
    %173 = vmatpush.msra.mxu0 0.0
    %174 = vmatpush.msra.mxu0 %v125
    %175 = vmatmul.f32.gmra.mxu0 %v157
    %v176 = vpop.f32.mrf.mxu0
    %v177 = vadd.f32 %v154, %v176
    %178 = vdwg.mxu0
    %s179 = scalar_lea.vmem [#allocation7], 8
    %v180 = vld [vmem:[%s179] sm:$0xff]
    %v182 = vsel %vm132, %v180, 0
    %184 = vmatpush.msra.mxu0 0.0
    %185 = vmatpush.msra.mxu0 0.0
    %186 = vmatpush.msra.mxu0 0.0
    %187 = vmatpush.msra.mxu0 0.0
    %188 = vmatpush.msra.mxu0 0.0
    %189 = vmatpush.msra.mxu0 0.0
    %190 = vmatpush.msra.mxu0 0.0
    %191 = vmatpush.msra.mxu0 0.0
    %192 = vmatpush.msra.mxu0 0.0
    %193 = vmatpush.msra.mxu0 0.0
    %194 = vmatpush.msra.mxu0 0.0
    %195 = vmatpush.msra.mxu0 0.0
    %196 = vmatpush.msra.mxu0 0.0
    %197 = vmatpush.msra.mxu0 0.0
    %198 = vmatpush.msra.mxu0 0.0
    %199 = vmatpush.msra.mxu0 %v129
    %200 = vmatmul.f32.gmra.mxu0 %v182
    %v201 = vpop.f32.mrf.mxu0
    %v202 = vadd.f32 0.0, %v201
    %203 = vdwg.mxu0
    %v205 = vsel %vm132, %v127, 0
    %207 = vmatpush.msra.mxu0 0.0
    %208 = vmatpush.msra.mxu0 0.0
    %209 = vmatpush.msra.mxu0 0.0
    %210 = vmatpush.msra.mxu0 0.0
    %211 = vmatpush.msra.mxu0 0.0
    %212 = vmatpush.msra.mxu0 0.0
    %213 = vmatpush.msra.mxu0 0.0
    %214 = vmatpush.msra.mxu0 0.0
    %215 = vmatpush.msra.mxu0 0.0
    %216 = vmatpush.msra.mxu0 0.0
    %217 = vmatpush.msra.mxu0 0.0
    %218 = vmatpush.msra.mxu0 0.0
    %219 = vmatpush.msra.mxu0 0.0
    %220 = vmatpush.msra.mxu0 0.0
    %221 = vmatpush.msra.mxu0 0.0
    %222 = vmatpush.msra.mxu0 %v125
    %223 = vmatmul.f32.gmra.mxu0 %v205
    %v224 = vpop.f32.mrf.mxu0
    %v225 = vadd.f32 %v202, %v224
    %226 = vdwg.mxu0
    %s227 = scalar_lea.vmem [#allocation2], 16
    %v228 = vld [vmem:[%s227] sm:$0xff]
    %s229 = scalar_lea.vmem [#allocation5], 16
    %v230 = vld [vmem:[%s229] sm:$0xff]
    %v232 = vsel %vm132, %v230, 0
    %234 = vmatpush.msra.mxu0 0.0
    %235 = vmatpush.msra.mxu0 0.0
    %236 = vmatpush.msra.mxu0 0.0
    %237 = vmatpush.msra.mxu0 0.0
    %238 = vmatpush.msra.mxu0 0.0
    %239 = vmatpush.msra.mxu0 0.0
    %240 = vmatpush.msra.mxu0 0.0
    %241 = vmatpush.msra.mxu0 0.0
    %242 = vmatpush.msra.mxu0 0.0
    %243 = vmatpush.msra.mxu0 0.0
    %244 = vmatpush.msra.mxu0 0.0
    %245 = vmatpush.msra.mxu0 0.0
    %246 = vmatpush.msra.mxu0 0.0
    %247 = vmatpush.msra.mxu0 0.0
    %248 = vmatpush.msra.mxu0 0.0
    %249 = vmatpush.msra.mxu0 %v228
    %250 = vmatmul.f32.gmra.mxu0 %v232
    %v251 = vpop.f32.mrf.mxu0
    %v252 = vadd.f32 0.0, %v251
    %253 = vdwg.mxu0
    %v254 = vadd.f32 %v177, %v252
    %s255 = scalar_lea.vmem [#allocation7], 16
    %v256 = vld [vmem:[%s255] sm:$0xff]
    %v258 = vsel %vm132, %v256, 0
    %260 = vmatpush.msra.mxu0 0.0
    %261 = vmatpush.msra.mxu0 0.0
    %262 = vmatpush.msra.mxu0 0.0
    %263 = vmatpush.msra.mxu0 0.0
    %264 = vmatpush.msra.mxu0 0.0
    %265 = vmatpush.msra.mxu0 0.0
    %266 = vmatpush.msra.mxu0 0.0
    %267 = vmatpush.msra.mxu0 0.0
    %268 = vmatpush.msra.mxu0 0.0
    %269 = vmatpush.msra.mxu0 0.0
    %270 = vmatpush.msra.mxu0 0.0
    %271 = vmatpush.msra.mxu0 0.0
    %272 = vmatpush.msra.mxu0 0.0
    %273 = vmatpush.msra.mxu0 0.0
    %274 = vmatpush.msra.mxu0 0.0
    %275 = vmatpush.msra.mxu0 %v228
    %276 = vmatmul.f32.gmra.mxu0 %v258
    %v277 = vpop.f32.mrf.mxu0
    %v278 = vadd.f32 0.0, %v277
    %279 = vdwg.mxu0
    %v280 = vadd.f32 %v225, %v278
    %v281 = vld [vmem:[%s3] sm:$0xff]
    %283 = vset.pattern.permute.xlu0 0
    %284 = vperm.xlu0 %283, %v281
    %v285 = vpop.permute.xlu0 %284
    %v287 = vadd.f32 %v254, %v285
    %v288 = vld [vmem:[%s4] sm:$0xff]
    %290 = vset.pattern.permute.xlu0 0
    %291 = vperm.xlu0 %290, %v288
    %v292 = vpop.permute.xlu0 %291
    %v294 = vadd.f32 %v280, %v292
    %v295 = vadd.f32 %v287, %v129
    %v296 = vxor.u32 %v294, 2147483648
    %v297 = vmul.f32 %v296, 1.442695
    %v298 = vpow.pop %v297
    %v299 = vadd.f32 %v298, 1.0
    %v300 = vrcp.pop %v299
    %v301 = vmul.f32 %v299, %v300
    %v302 = vsub.f32 1.0, %v301
    %v303 = vmul.f32 %v300, %v302
    %v304 = vadd.f32 %v300, %v303
    %vm305 = vweird.f32 %v299
    %vm306 = vweird.f32 %v300
    %vm307 = vmor %vm305, %vm306
    %v308 = vsel %vm307, %v300, %v304
    %v309 = vand.u32 2147483647, %v299
    %vm310 = vcmp.eq.f32.partialorder %v309, 8.507059e+37
    %v311 = vand.u32 %v299, 2147483648
    %v312 = vor.u32 1.1754944e-38, %v311
    %v313 = vsel %vm310, %v312, %v308
    %v314 = vmul.f32 1.0, %v313
    %v315 = vmul.f32 %v295, %v314
    %v316 = vrot.slane %v315, 4
    %v317 = vadd.f32 %v315, %v316
    %v318 = vrot.slane %v317, 2
    %v319 = vadd.f32 %v317, %v318
    %v320 = vrot.slane %v319, 1
    %v321 = vadd.f32 %v319, %v320
    %322 = vmatpush.msra.mxu0 %v120
    %323 = vmatpush.msra.mxu0 %v119
    %324 = vmatpush.msra.mxu0 %v118
    %325 = vmatpush.msra.mxu0 %v117
    %326 = vmatpush.msra.mxu0 %v116
    %327 = vmatpush.msra.mxu0 %v115
    %328 = vmatpush.msra.mxu0 %v114
    %329 = vmatpush.msra.mxu0 %v113
    %330 = vmatpush.msra.mxu0 %v112
    %331 = vmatpush.msra.mxu0 %v111
    %332 = vmatpush.msra.mxu0 %v110
    %333 = vmatpush.msra.mxu0 %v109
    %334 = vmatpush.msra.mxu0 %v108
    %335 = vmatpush.msra.mxu0 %v107
    %336 = vmatpush.msra.mxu0 %v106
    %337 = vmatpush.msra.mxu0 %v105
    %338 = vmatmul.f32.gmra.mxu0 %v321
    %v339 = vpop.f32.mrf.mxu0
    %v340 = vadd.f32 0.0, %v339
    %341 = vdwg.mxu0
    %v342 = vmul.f32 %v340, 0.0078125
    %v343 = vperm.slane %v342, 0
    %v344 = vsub.f32 %v315, %v343
    %v345 = vmul.f32 %v344, %v344
    %v346 = vrot.slane %v345, 4
    %v347 = vadd.f32 %v345, %v346
    %v348 = vrot.slane %v347, 2
    %v349 = vadd.f32 %v347, %v348
    %v350 = vrot.slane %v349, 1
    %v351 = vadd.f32 %v349, %v350
    %352 = vmatpush.msra.mxu0 %v120
    %353 = vmatpush.msra.mxu0 %v119
    %354 = vmatpush.msra.mxu0 %v118
    %355 = vmatpush.msra.mxu0 %v117
    %356 = vmatpush.msra.mxu0 %v116
    %357 = vmatpush.msra.mxu0 %v115
    %358 = vmatpush.msra.mxu0 %v114
    %359 = vmatpush.msra.mxu0 %v113
    %360 = vmatpush.msra.mxu0 %v112
    %361 = vmatpush.msra.mxu0 %v111
    %362 = vmatpush.msra.mxu0 %v110
    %363 = vmatpush.msra.mxu0 %v109
    %364 = vmatpush.msra.mxu0 %v108
    %365 = vmatpush.msra.mxu0 %v107
    %366 = vmatpush.msra.mxu0 %v106
    %367 = vmatpush.msra.mxu0 %v105
    %368 = vmatmul.f32.gmra.mxu0 %v351
    %v369 = vpop.f32.mrf.mxu0
    %v370 = vadd.f32 0.0, %v369
    %371 = vdwg.mxu0
    %v372 = vmul.f32 %v370, 0.0078125
    %v373 = vadd.f32 %v372, 1e-05
    %v374 = vrsqrt.pop %v373
    %v375 = vmul.f32 %v374, %v373
    %v376 = vmul.f32 %v375, %v374
    %v377 = vmul.f32 0.5, %v376
    %v378 = vsub.f32 1.5, %v377
    %v379 = vmul.f32 %v374, %v378
    %vm380 = vweird.f32 %v373
    %vm381 = vweird.f32 %v374
    %vm382 = vmor %vm380, %vm381
    %v383 = vsel %vm382, %v374, %v379
    %v384 = vperm.slane %v383, 0
    %v385 = vmul.f32 %v344, %v384
    %v386 = vmul.f32 %v385, %v121
    %v387 = vadd.f32 %v386, %v122
    %v388 = vld [vmem:[%s9] sm:$0xff]
    %390 = vset.pattern.permute.xlu0 0
    %391 = vperm.xlu0 %390, %v388
    %v392 = vpop.permute.xlu0 %391
    %v395 = vsel %vm132, %v123, 0
    %397 = vmatpush.msra.mxu0 0.0
    %398 = vmatpush.msra.mxu0 0.0
    %399 = vmatpush.msra.mxu0 0.0
    %400 = vmatpush.msra.mxu0 0.0
    %401 = vmatpush.msra.mxu0 0.0
    %402 = vmatpush.msra.mxu0 0.0
    %403 = vmatpush.msra.mxu0 0.0
    %404 = vmatpush.msra.mxu0 0.0
    %405 = vmatpush.msra.mxu0 0.0
    %406 = vmatpush.msra.mxu0 0.0
    %407 = vmatpush.msra.mxu0 0.0
    %408 = vmatpush.msra.mxu0 0.0
    %409 = vmatpush.msra.mxu0 0.0
    %410 = vmatpush.msra.mxu0 0.0
    %411 = vmatpush.msra.mxu0 0.0
    %412 = vmatpush.msra.mxu0 %v387
    %413 = vmatmul.f32.gmra.mxu0 %v395
    %v414 = vpop.f32.mrf.mxu0
    %v415 = vadd.f32 %v392, %v414
    %416 = vdwg.mxu0
    %v417 = vadd.f32 %v415, %v387
    %v418 = vxor.u32 %v417, 2147483648
    %v419 = vmul.f32 %v418, 1.442695
    %v420 = vpow.pop %v419
    %v421 = vadd.f32 %v420, 1.0
    %v422 = vrcp.pop %v421
    %v423 = vmul.f32 %v421, %v422
    %v424 = vsub.f32 1.0, %v423
    %v425 = vmul.f32 %v422, %v424
    %v426 = vadd.f32 %v422, %v425
    %vm427 = vweird.f32 %v421
    %vm428 = vweird.f32 %v422
    %vm429 = vmor %vm427, %vm428
    %v430 = vsel %vm429, %v422, %v426
    %v431 = vand.u32 2147483647, %v421
    %vm432 = vcmp.eq.f32.partialorder %v431, 8.507059e+37
    %v433 = vand.u32 %v421, 2147483648
    %v434 = vor.u32 1.1754944e-38, %v433
    %v435 = vsel %vm432, %v434, %v430
    %v436 = vmul.f32 1.0, %v435
    %v437 = vld [vmem:[%s11] sm:$0x3]
    %439 = vset.pattern.permute.xlu0 0
    %440 = vperm.xlu0 %439, %v437
    %v441 = vpop.permute.xlu0 %440
    %v444 = vsel %vm132, %v124, 0
    %446 = vmatpush.msra.mxu0 0.0
    %447 = vmatpush.msra.mxu0 0.0
    %448 = vmatpush.msra.mxu0 0.0
    %449 = vmatpush.msra.mxu0 0.0
    %450 = vmatpush.msra.mxu0 0.0
    %451 = vmatpush.msra.mxu0 0.0
    %452 = vmatpush.msra.mxu0 0.0
    %453 = vmatpush.msra.mxu0 0.0
    %454 = vmatpush.msra.mxu0 0.0
    %455 = vmatpush.msra.mxu0 0.0
    %456 = vmatpush.msra.mxu0 0.0
    %457 = vmatpush.msra.mxu0 0.0
    %458 = vmatpush.msra.mxu0 0.0
    %459 = vmatpush.msra.mxu0 0.0
    %460 = vmatpush.msra.mxu0 0.0
    %461 = vmatpush.msra.mxu0 %v436
    %462 = vmatmul.f32.gmra.mxu0 %v444
    %v463 = vpop.f32.mrf.mxu0
    %v464 = vadd.f32 %v441, %v463
    %465 = vdwg.mxu0
    %466 = vst [vmem:[#allocation10] sm:$0x3] %v464
    %s467 = scalar_lea.vmem [#allocation2], 24
    %v468 = vld [vmem:[%s467] sm:$0xff]
    %v469 = vld [vmem:[#allocation5] sm:$0xff]
    %v470 = vld [vmem:[#allocation7] sm:$0xff]
    %s471 = scalar_lea.vmem [#allocation2], 32
    %v472 = vld [vmem:[%s471] sm:$0xff]
    %v473 = vld [vmem:[%s130] sm:$0xff]
    %v475 = vsel %vm132, %v473, 0
    %477 = vmatpush.msra.mxu0 0.0
    %478 = vmatpush.msra.mxu0 0.0
    %479 = vmatpush.msra.mxu0 0.0
    %480 = vmatpush.msra.mxu0 0.0
    %481 = vmatpush.msra.mxu0 0.0
    %482 = vmatpush.msra.mxu0 0.0
    %483 = vmatpush.msra.mxu0 0.0
    %484 = vmatpush.msra.mxu0 0.0
    %485 = vmatpush.msra.mxu0 0.0
    %486 = vmatpush.msra.mxu0 0.0
    %487 = vmatpush.msra.mxu0 0.0
    %488 = vmatpush.msra.mxu0 0.0
    %489 = vmatpush.msra.mxu0 0.0
    %490 = vmatpush.msra.mxu0 0.0
    %491 = vmatpush.msra.mxu0 0.0
    %492 = vmatpush.msra.mxu0 %v472
    %493 = vmatmul.f32.gmra.mxu0 %v475
    %v494 = vpop.f32.mrf.mxu0
    %v495 = vadd.f32 0.0, %v494
    %496 = vdwg.mxu0
    %v498 = vsel %vm132, %v469, 0
    %500 = vmatpush.msra.mxu0 0.0
    %501 = vmatpush.msra.mxu0 0.0
    %502 = vmatpush.msra.mxu0 0.0
    %503 = vmatpush.msra.mxu0 0.0
    %504 = vmatpush.msra.mxu0 0.0
    %505 = vmatpush.msra.mxu0 0.0
    %506 = vmatpush.msra.mxu0 0.0
    %507 = vmatpush.msra.mxu0 0.0
    %508 = vmatpush.msra.mxu0 0.0
    %509 = vmatpush.msra.mxu0 0.0
    %510 = vmatpush.msra.mxu0 0.0
    %511 = vmatpush.msra.mxu0 0.0
    %512 = vmatpush.msra.mxu0 0.0
    %513 = vmatpush.msra.mxu0 0.0
    %514 = vmatpush.msra.mxu0 0.0
    %515 = vmatpush.msra.mxu0 %v468
    %516 = vmatmul.f32.gmra.mxu0 %v498
    %v517 = vpop.f32.mrf.mxu0
    %v518 = vadd.f32 %v495, %v517
    %519 = vdwg.mxu0
    %v520 = vld [vmem:[%s179] sm:$0xff]
    %v522 = vsel %vm132, %v520, 0
    %524 = vmatpush.msra.mxu0 0.0
    %525 = vmatpush.msra.mxu0 0.0
    %526 = vmatpush.msra.mxu0 0.0
    %527 = vmatpush.msra.mxu0 0.0
    %528 = vmatpush.msra.mxu0 0.0
    %529 = vmatpush.msra.mxu0 0.0
    %530 = vmatpush.msra.mxu0 0.0
    %531 = vmatpush.msra.mxu0 0.0
    %532 = vmatpush.msra.mxu0 0.0
    %533 = vmatpush.msra.mxu0 0.0
    %534 = vmatpush.msra.mxu0 0.0
    %535 = vmatpush.msra.mxu0 0.0
    %536 = vmatpush.msra.mxu0 0.0
    %537 = vmatpush.msra.mxu0 0.0
    %538 = vmatpush.msra.mxu0 0.0
    %539 = vmatpush.msra.mxu0 %v472
    %540 = vmatmul.f32.gmra.mxu0 %v522
    %v541 = vpop.f32.mrf.mxu0
    %v542 = vadd.f32 0.0, %v541
    %543 = vdwg.mxu0
    %v545 = vsel %vm132, %v470, 0
    %547 = vmatpush.msra.mxu0 0.0
    %548 = vmatpush.msra.mxu0 0.0
    %549 = vmatpush.msra.mxu0 0.0
    %550 = vmatpush.msra.mxu0 0.0
    %551 = vmatpush.msra.mxu0 0.0
    %552 = vmatpush.msra.mxu0 0.0
    %553 = vmatpush.msra.mxu0 0.0
    %554 = vmatpush.msra.mxu0 0.0
    %555 = vmatpush.msra.mxu0 0.0
    %556 = vmatpush.msra.mxu0 0.0
    %557 = vmatpush.msra.mxu0 0.0
    %558 = vmatpush.msra.mxu0 0.0
    %559 = vmatpush.msra.mxu0 0.0
    %560 = vmatpush.msra.mxu0 0.0
    %561 = vmatpush.msra.mxu0 0.0
    %562 = vmatpush.msra.mxu0 %v468
    %563 = vmatmul.f32.gmra.mxu0 %v545
    %v564 = vpop.f32.mrf.mxu0
    %v565 = vadd.f32 %v542, %v564
    %566 = vdwg.mxu0
    %s567 = scalar_lea.vmem [#allocation2], 40
    %v568 = vld [vmem:[%s567] sm:$0xff]
    %v569 = vld [vmem:[%s229] sm:$0xff]
    %v571 = vsel %vm132, %v569, 0
    %573 = vmatpush.msra.mxu0 0.0
    %574 = vmatpush.msra.mxu0 0.0
    %575 = vmatpush.msra.mxu0 0.0
    %576 = vmatpush.msra.mxu0 0.0
    %577 = vmatpush.msra.mxu0 0.0
    %578 = vmatpush.msra.mxu0 0.0
    %579 = vmatpush.msra.mxu0 0.0
    %580 = vmatpush.msra.mxu0 0.0
    %581 = vmatpush.msra.mxu0 0.0
    %582 = vmatpush.msra.mxu0 0.0
    %583 = vmatpush.msra.mxu0 0.0
    %584 = vmatpush.msra.mxu0 0.0
    %585 = vmatpush.msra.mxu0 0.0
    %586 = vmatpush.msra.mxu0 0.0
    %587 = vmatpush.msra.mxu0 0.0
    %588 = vmatpush.msra.mxu0 %v568
    %589 = vmatmul.f32.gmra.mxu0 %v571
    %v590 = vpop.f32.mrf.mxu0
    %v591 = vadd.f32 0.0, %v590
    %592 = vdwg.mxu0
    %v593 = vadd.f32 %v518, %v591
    %v594 = vld [vmem:[%s255] sm:$0xff]
    %v596 = vsel %vm132, %v594, 0
    %598 = vmatpush.msra.mxu0 0.0
    %599 = vmatpush.msra.mxu0 0.0
    %600 = vmatpush.msra.mxu0 0.0
    %601 = vmatpush.msra.mxu0 0.0
    %602 = vmatpush.msra.mxu0 0.0
    %603 = vmatpush.msra.mxu0 0.0
    %604 = vmatpush.msra.mxu0 0.0
    %605 = vmatpush.msra.mxu0 0.0
    %606 = vmatpush.msra.mxu0 0.0
    %607 = vmatpush.msra.mxu0 0.0
    %608 = vmatpush.msra.mxu0 0.0
    %609 = vmatpush.msra.mxu0 0.0
    %610 = vmatpush.msra.mxu0 0.0
    %611 = vmatpush.msra.mxu0 0.0
    %612 = vmatpush.msra.mxu0 0.0
    %613 = vmatpush.msra.mxu0 %v568
    %614 = vmatmul.f32.gmra.mxu0 %v596
    %v615 = vpop.f32.mrf.mxu0
    %v616 = vadd.f32 0.0, %v615
    %617 = vdwg.mxu0
    %v618 = vadd.f32 %v565, %v616
    %v619 = vld [vmem:[%s3] sm:$0xff]
    %621 = vset.pattern.permute.xlu0 0
    %622 = vperm.xlu0 %621, %v619
    %v623 = vpop.permute.xlu0 %622
    %v625 = vadd.f32 %v593, %v623
    %v626 = vld [vmem:[%s4] sm:$0xff]
    %628 = vset.pattern.permute.xlu0 0
    %629 = vperm.xlu0 %628, %v626
    %v630 = vpop.permute.xlu0 %629
    %v632 = vadd.f32 %v618, %v630
    %v633 = vadd.f32 %v625, %v472
    %v634 = vxor.u32 %v632, 2147483648
    %v635 = vmul.f32 %v634, 1.442695
    %v636 = vpow.pop %v635
    %v637 = vadd.f32 %v636, 1.0
    %v638 = vrcp.pop %v637
    %v639 = vmul.f32 %v637, %v638
    %v640 = vsub.f32 1.0, %v639
    %v641 = vmul.f32 %v638, %v640
    %v642 = vadd.f32 %v638, %v641
    %vm643 = vweird.f32 %v637
    %vm644 = vweird.f32 %v638
    %vm645 = vmor %vm643, %vm644
    %v646 = vsel %vm645, %v638, %v642
    %v647 = vand.u32 2147483647, %v637
    %vm648 = vcmp.eq.f32.partialorder %v647, 8.507059e+37
    %v649 = vand.u32 %v637, 2147483648
    %v650 = vor.u32 1.1754944e-38, %v649
    %v651 = vsel %vm648, %v650, %v646
    %v652 = vmul.f32 1.0, %v651
    %v653 = vmul.f32 %v633, %v652
    %v654 = vrot.slane %v653, 4
    %v655 = vadd.f32 %v653, %v654
    %v656 = vrot.slane %v655, 2
    %v657 = vadd.f32 %v655, %v656
    %v658 = vrot.slane %v657, 1
    %v659 = vadd.f32 %v657, %v658
    %660 = vmatpush.msra.mxu0 %v120
    %661 = vmatpush.msra.mxu0 %v119
    %662 = vmatpush.msra.mxu0 %v118
    %663 = vmatpush.msra.mxu0 %v117
    %664 = vmatpush.msra.mxu0 %v116
    %665 = vmatpush.msra.mxu0 %v115
    %666 = vmatpush.msra.mxu0 %v114
    %667 = vmatpush.msra.mxu0 %v113
    %668 = vmatpush.msra.mxu0 %v112
    %669 = vmatpush.msra.mxu0 %v111
    %670 = vmatpush.msra.mxu0 %v110
    %671 = vmatpush.msra.mxu0 %v109
    %672 = vmatpush.msra.mxu0 %v108
    %673 = vmatpush.msra.mxu0 %v107
    %674 = vmatpush.msra.mxu0 %v106
    %675 = vmatpush.msra.mxu0 %v105
    %676 = vmatmul.f32.gmra.mxu0 %v659
    %v677 = vpop.f32.mrf.mxu0
    %v678 = vadd.f32 0.0, %v677
    %679 = vdwg.mxu0
    %v680 = vmul.f32 %v678, 0.0078125
    %v681 = vperm.slane %v680, 0
    %v682 = vsub.f32 %v653, %v681
    %v683 = vmul.f32 %v682, %v682
    %v684 = vrot.slane %v683, 4
    %v685 = vadd.f32 %v683, %v684
    %v686 = vrot.slane %v685, 2
    %v687 = vadd.f32 %v685, %v686
    %v688 = vrot.slane %v687, 1
    %v689 = vadd.f32 %v687, %v688
    %690 = vmatpush.msra.mxu0 %v120
    %691 = vmatpush.msra.mxu0 %v119
    %692 = vmatpush.msra.mxu0 %v118
    %693 = vmatpush.msra.mxu0 %v117
    %694 = vmatpush.msra.mxu0 %v116
    %695 = vmatpush.msra.mxu0 %v115
    %696 = vmatpush.msra.mxu0 %v114
    %697 = vmatpush.msra.mxu0 %v113
    %698 = vmatpush.msra.mxu0 %v112
    %699 = vmatpush.msra.mxu0 %v111
    %700 = vmatpush.msra.mxu0 %v110
    %701 = vmatpush.msra.mxu0 %v109
    %702 = vmatpush.msra.mxu0 %v108
    %703 = vmatpush.msra.mxu0 %v107
    %704 = vmatpush.msra.mxu0 %v106
    %705 = vmatpush.msra.mxu0 %v105
    %706 = vmatmul.f32.gmra.mxu0 %v689
    %v707 = vpop.f32.mrf.mxu0
    %v708 = vadd.f32 0.0, %v707
    %709 = vdwg.mxu0
    %v710 = vmul.f32 %v708, 0.0078125
    %v711 = vadd.f32 %v710, 1e-05
    %v712 = vrsqrt.pop %v711
    %v713 = vmul.f32 %v712, %v711
    %v714 = vmul.f32 %v713, %v712
    %v715 = vmul.f32 0.5, %v714
    %v716 = vsub.f32 1.5, %v715
    %v717 = vmul.f32 %v712, %v716
    %vm718 = vweird.f32 %v711
    %vm719 = vweird.f32 %v712
    %vm720 = vmor %vm718, %vm719
    %v721 = vsel %vm720, %v712, %v717
    %v722 = vperm.slane %v721, 0
    %v723 = vmul.f32 %v682, %v722
    %v724 = vmul.f32 %v723, %v121
    %v725 = vadd.f32 %v724, %v122
    %v726 = vld [vmem:[%s9] sm:$0xff]
    %728 = vset.pattern.permute.xlu0 0
    %729 = vperm.xlu0 %728, %v726
    %v730 = vpop.permute.xlu0 %729
    %732 = vmatpush.msra.mxu0 0.0
    %733 = vmatpush.msra.mxu0 0.0
    %734 = vmatpush.msra.mxu0 0.0
    %735 = vmatpush.msra.mxu0 0.0
    %736 = vmatpush.msra.mxu0 0.0
    %737 = vmatpush.msra.mxu0 0.0
    %738 = vmatpush.msra.mxu0 0.0
    %739 = vmatpush.msra.mxu0 0.0
    %740 = vmatpush.msra.mxu0 0.0
    %741 = vmatpush.msra.mxu0 0.0
    %742 = vmatpush.msra.mxu0 0.0
    %743 = vmatpush.msra.mxu0 0.0
    %744 = vmatpush.msra.mxu0 0.0
    %745 = vmatpush.msra.mxu0 0.0
    %746 = vmatpush.msra.mxu0 0.0
    %747 = vmatpush.msra.mxu0 %v725
    %748 = vmatmul.f32.gmra.mxu0 %v395
    %v749 = vpop.f32.mrf.mxu0
    %v750 = vadd.f32 %v730, %v749
    %751 = vdwg.mxu0
    %v752 = vadd.f32 %v750, %v725
    %v753 = vxor.u32 %v752, 2147483648
    %v754 = vmul.f32 %v753, 1.442695
    %v755 = vpow.pop %v754
    %v756 = vadd.f32 %v755, 1.0
    %v757 = vrcp.pop %v756
    %v758 = vmul.f32 %v756, %v757
    %v759 = vsub.f32 1.0, %v758
    %v760 = vmul.f32 %v757, %v759
    %v761 = vadd.f32 %v757, %v760
    %vm762 = vweird.f32 %v756
    %vm763 = vweird.f32 %v757
    %vm764 = vmor %vm762, %vm763
    %v765 = vsel %vm764, %v757, %v761
    %v766 = vand.u32 2147483647, %v756
    %vm767 = vcmp.eq.f32.partialorder %v766, 8.507059e+37
    %v768 = vand.u32 %v756, 2147483648
    %v769 = vor.u32 1.1754944e-38, %v768
    %v770 = vsel %vm767, %v769, %v765
    %v771 = vmul.f32 1.0, %v770
    %v772 = vld [vmem:[%s11] sm:$0x3]
    %774 = vset.pattern.permute.xlu0 0
    %775 = vperm.xlu0 %774, %v772
    %v776 = vpop.permute.xlu0 %775
    %778 = vmatpush.msra.mxu0 0.0
    %779 = vmatpush.msra.mxu0 0.0
    %780 = vmatpush.msra.mxu0 0.0
    %781 = vmatpush.msra.mxu0 0.0
    %782 = vmatpush.msra.mxu0 0.0
    %783 = vmatpush.msra.mxu0 0.0
    %784 = vmatpush.msra.mxu0 0.0
    %785 = vmatpush.msra.mxu0 0.0
    %786 = vmatpush.msra.mxu0 0.0
    %787 = vmatpush.msra.mxu0 0.0
    %788 = vmatpush.msra.mxu0 0.0
    %789 = vmatpush.msra.mxu0 0.0
    %790 = vmatpush.msra.mxu0 0.0
    %791 = vmatpush.msra.mxu0 0.0
    %792 = vmatpush.msra.mxu0 0.0
    %793 = vmatpush.msra.mxu0 %v771
    %794 = vmatmul.f32.gmra.mxu0 %v444
    %v795 = vpop.f32.mrf.mxu0
    %v796 = vadd.f32 %v776, %v795
    %797 = vdwg.mxu0
    %s798 = scalar_lea.vmem [#allocation10], 2
    %799 = vst [vmem:[%s798] sm:$0x3] %v796
    // Predicated region
    $region66: #{tpu_custom_call.1} parent=1 // pred_check
      _
    $region67: #{tpu_custom_call.1} parent=1 // pred_check_branch
      %801 = sbr.rel (0) target = $region69
    $region68: #{tpu_custom_call.1} parent=1 // pred_region
      %803 = vsyncadd [#allocation4], 0
      %s804 = sshll.u32 [#allocation10], 4
      %s805 = int_to_ptr.vmem [resolvable:$true] %s804
      %s806 = sshll.u32 %s12, 4
      %s807 = int_to_ptr.hbm [resolvable:$true] %s806
      %812 = dma.vmem_to_hbm [thread:$0]  %s805, 64, %s807, [#allocation4], 32, 32, 2
    $region69: #{tpu_custom_call.1} parent=1 // pred_fallthru
      _
    // Predicated region
    $region70: #{tpu_custom_call.1} parent=1 // pred_check
      _
    $region71: #{tpu_custom_call.1} parent=1 // pred_check_branch
      %814 = sbr.rel (0) target = $region73
    $region72: #{tpu_custom_call.1} parent=1 // pred_region
      %816 = dma.done [#allocation4], 64
    $region73: #{tpu_custom_call.1} parent=1 // pred_fallthru
      _
    %817 = vsyncpa [#allocation3], 1
    %818 = vsyncpa [#allocation6], 1
    %819 = vsyncpa [#allocation9], 1
    %820 = vsyncpa [#allocation4], 1

</llo_original>
